<compile_context>
chip_gen: v5e
topology: v5e:2x2
jax: 0.10.0
libtpu: 0.0.40
codegen_flags: <defaults>
</compile_context>

<pallas_src>
import jax
import jax.numpy as jnp
from jax import lax
from jax.experimental import pallas as pl
from jax.experimental.pallas import tpu as pltpu

F = 20                   # feature width of the module (nn.Linear(20, 20))
_ROW_C1 = 0              # row  0        : c1 = b @ rand_weight + 1
_ROW_B = 8               # row  8        : b              (sublane-aligned)
_ROW_M1 = 16             # rows [16, 36) : M1 = W^T @ rand_weight (aligned start)
_ROW_WT = 40             # rows [40, 60) : W^T            (aligned start)
_N_ROWS = 64             # padded sublane count (multiple of 8)


def fixed_hidden_mlp_kernel(x_ref, p_ref, out_ref):
    # x_ref  : (B, F)   input, VMEM
    # p_ref  : (64, F)  packed constants, VMEM (single DMA)
    # out_ref: (1, 1)   scalar result, SMEM
    x = x_ref[...]
    c1 = p_ref[_ROW_C1:_ROW_C1 + 1, :]       # (1, F)  fused bias (the "+1" folded in)
    b = p_ref[_ROW_B:_ROW_B + 1, :]          # (1, F)  shared linear bias
    m1 = p_ref[_ROW_M1:_ROW_M1 + F, :]       # (F, F)  fused first two matmuls
    wt = p_ref[_ROW_WT:_ROW_WT + F, :]       # (F, F)  shared linear weight^T

    # relu(linear(X) @ rand_weight + 1)  ==  relu(X @ M1 + c1)
    h = jnp.maximum(jnp.dot(x, m1, preferred_element_type=jnp.float32) + c1, 0.0)
    # X = linear(X)   (shared weights)
    h = jnp.dot(h, wt, preferred_element_type=jnp.float32) + b

    # while X.abs().sum() > 1: X /= 2 ; return X.sum()
    # Reduce once, then halve only the two reduced scalars each iteration
    # (division by 2 is exact in fp -> identical result, far shorter chain,
    #  and the loop itself runs purely on the scalar unit).
    s_abs0 = jnp.sum(jnp.abs(h), keepdims=True)[0, 0]   # f32 scalar
    s0 = jnp.sum(h, keepdims=True)[0, 0]                # f32 scalar

    def cond(carry):
        sa, _ = carry
        return sa > 1.0

    def body(carry):
        sa, sv = carry
        return sa * 0.5, sv * 0.5

    _, s_final = lax.while_loop(cond, body, (s_abs0, s0))
    out_ref[0, 0] = s_final


def pack_params(w, b, rand_weight):
    """Precompute the fused constants and pack all operands into one (64, F) slab.

    Hoisted out of the per-call path: computed once, reused for every forward.
    """
    wt = w.T                          # (F, F) so X @ Wt == X @ W.T
    m1 = wt @ rand_weight             # fused:  (X@Wt) @ rw == X @ (Wt@rw)
    c1 = b @ rand_weight + 1.0        # fused bias of the relu stage
    p = jnp.zeros((_N_ROWS, F), jnp.float32)
    p = p.at[_ROW_C1, :].set(c1)
    p = p.at[_ROW_B, :].set(b)
    p = p.at[_ROW_M1:_ROW_M1 + F, :].set(m1)
    p = p.at[_ROW_WT:_ROW_WT + F, :].set(wt)
    return p


@jax.jit
def fixed_hidden_mlp(x, packed_params):
    """x: (B, F) f32; packed_params: (64, F) f32 from pack_params()."""
    vmem = pl.BlockSpec(memory_space=pltpu.MemorySpace.VMEM)
    smem = pl.BlockSpec(memory_space=pltpu.MemorySpace.SMEM)
    out = pl.pallas_call(
        fixed_hidden_mlp_kernel,
        out_shape=jax.ShapeDtypeStruct((1, 1), jnp.float32),
        in_specs=[vmem, vmem],
        out_specs=smem,
    )(x, packed_params)
    return out[0, 0]


def reference_module(x, w, b, rand_weight):
    """Pure-JAX reference mirroring the PyTorch forward (original op order)."""
    h = x @ w.T + b
    h = jnp.maximum(h @ rand_weight + 1.0, 0.0)
    h = h @ w.T + b
    h = lax.while_loop(lambda c: jnp.sum(jnp.abs(c)) > 1.0, lambda c: c / 2.0, h)
    return jnp.sum(h)


def reference_fused(x, packed_params):
    """Pure-JAX reference of the exact fused math the kernel executes."""
    c1 = packed_params[_ROW_C1:_ROW_C1 + 1, :]
    b = packed_params[_ROW_B:_ROW_B + 1, :]
    m1 = packed_params[_ROW_M1:_ROW_M1 + F, :]
    wt = packed_params[_ROW_WT:_ROW_WT + F, :]
    h = jnp.maximum(x @ m1 + c1, 0.0)
    h = h @ wt + b
    h = lax.while_loop(lambda c: jnp.sum(jnp.abs(c)) > 1.0, lambda c: c / 2.0, h)
    return jnp.sum(h)


if __name__ == "__main__":
    key = jax.random.PRNGKey(0)
    k_x, k_rw, k_w, k_b = jax.random.split(key, 4)

    B = 2
    # deterministic synthetic "parameters" (not loaded from a checkpoint)
    x = jax.random.uniform(k_x, (B, F), dtype=jnp.float32)               # like torch.rand(2, 20)
    rand_weight = jax.random.uniform(k_rw, (F, F), dtype=jnp.float32)    # torch.rand((20, 20))
    bound = 1.0 / jnp.sqrt(jnp.float32(F))
    w = jax.random.uniform(k_w, (F, F), dtype=jnp.float32, minval=-bound, maxval=bound)
    b = jax.random.uniform(k_b, (F,), dtype=jnp.float32, minval=-bound, maxval=bound)

    packed = pack_params(w, b, rand_weight)   # constants: computed once, reused per call

    out = fixed_hidden_mlp(x, packed)
    out = jax.block_until_ready(out)

    # Tight check: identical fused math / identical constants as the kernel.
    ref_f = reference_fused(x, packed)
    assert jnp.allclose(out, ref_f, rtol=1e-5, atol=1e-5), (out, ref_f)

    # Semantic check vs. the original (unfused) PyTorch op order. Slightly
    # looser tolerance only to absorb MXU rounding-order differences caused by
    # the algebraic fusion of the first two matmuls; the math is identical.
    ref_m = reference_module(x, w, b, rand_weight)
    assert jnp.allclose(out, ref_m, rtol=2e-2, atol=2e-2), (out, ref_m)

    # The halving loop guarantees sum(|X|) <= 1, hence |out| <= 1.
    assert float(jnp.abs(out)) <= 1.0 + 1e-6

    print("KERNEL_OK")
</pallas_src>

<mosaic_0001>
module attributes {stable_mosaic.version = 11 : i64} {
  func.func @fixed_hidden_mlp_kernel(%arg0: memref<2x20xf32, #tpu.memory_space<vmem>>, %arg1: memref<64x20xf32, #tpu.memory_space<vmem>>, %arg2: memref<1x1xf32, #tpu.memory_space<smem>>) attributes {dimension_semantics = [], scalar_prefetch = 0 : i64, scratch_operands = 0 : i64, tpu.core_type = #tpu.core_type<tc>} {
    %c0 = arith.constant 0 : index
    %c0_0 = arith.constant 0 : index
    %0 = vector.load %arg0[%c0, %c0_0] : memref<2x20xf32, #tpu.memory_space<vmem>>, vector<2x20xf32>
    %c0_1 = arith.constant 0 : index
    %c0_2 = arith.constant 0 : index
    %1 = vector.load %arg1[%c0_1, %c0_2] : memref<64x20xf32, #tpu.memory_space<vmem>>, vector<1x20xf32>
    %c8 = arith.constant 8 : index
    %c0_3 = arith.constant 0 : index
    %2 = vector.load %arg1[%c8, %c0_3] : memref<64x20xf32, #tpu.memory_space<vmem>>, vector<1x20xf32>
    %c16 = arith.constant 16 : index
    %c0_4 = arith.constant 0 : index
    %3 = vector.load %arg1[%c16, %c0_4] : memref<64x20xf32, #tpu.memory_space<vmem>>, vector<20x20xf32>
    %c40 = arith.constant 40 : index
    %c0_5 = arith.constant 0 : index
    %4 = vector.load %arg1[%c40, %c0_5] : memref<64x20xf32, #tpu.memory_space<vmem>>, vector<20x20xf32>
    %cst = arith.constant dense<0.000000e+00> : vector<2x20xf32>
    %5 = tpu.matmul %0, %3, %cst {dimension_numbers = #tpu.dot_dimension_numbers<[1], [0], [0], [1], [0, 0, 1, 1], [], []>} : vector<2x20xf32>, vector<20x20xf32>, vector<2x20xf32> -> vector<2x20xf32>
    %6 = vector.broadcast %1 : vector<1x20xf32> to vector<2x20xf32>
    %7 = arith.addf %5, %6 : vector<2x20xf32>
    %cst_6 = arith.constant 0.000000e+00 : f32
    %8 = vector.broadcast %cst_6 : f32 to vector<2x20xf32>
    %9 = arith.maximumf %7, %8 : vector<2x20xf32>
    %cst_7 = arith.constant dense<0.000000e+00> : vector<2x20xf32>
    %10 = tpu.matmul %9, %4, %cst_7 {dimension_numbers = #tpu.dot_dimension_numbers<[1], [0], [0], [1], [0, 0, 1, 1], [], []>} : vector<2x20xf32>, vector<20x20xf32>, vector<2x20xf32> -> vector<2x20xf32>
    %11 = vector.broadcast %2 : vector<1x20xf32> to vector<2x20xf32>
    %12 = arith.addf %10, %11 : vector<2x20xf32>
    %13 = math.absf %12 : vector<2x20xf32>
    %14 = vector.shape_cast %13 : vector<2x20xf32> to vector<1x2x20xf32>
    %cst_8 = arith.constant dense<0.000000e+00> : vector<1xf32>
    %15 = vector.multi_reduction <add>, %14, %cst_8 [1, 2] : vector<1x2x20xf32> to vector<1xf32>
    %16 = vector.shape_cast %15 : vector<1xf32> to vector<1x1x1xf32>
    %17 = vector.extract %16[0, 0, 0] : f32 from vector<1x1x1xf32>
    %18 = vector.broadcast %17 : f32 to vector<1x1xf32>
    %19 = vector.extract %18[0, 0] : f32 from vector<1x1xf32>
    %20 = vector.shape_cast %12 : vector<2x20xf32> to vector<1x2x20xf32>
    %cst_9 = arith.constant dense<0.000000e+00> : vector<1xf32>
    %21 = vector.multi_reduction <add>, %20, %cst_9 [1, 2] : vector<1x2x20xf32> to vector<1xf32>
    %22 = vector.shape_cast %21 : vector<1xf32> to vector<1x1x1xf32>
    %23 = vector.extract %22[0, 0, 0] : f32 from vector<1x1x1xf32>
    %24 = vector.broadcast %23 : f32 to vector<1x1xf32>
    %25 = vector.extract %24[0, 0] : f32 from vector<1x1xf32>
    %26:2 = scf.while (%arg3 = %19, %arg4 = %25) : (f32, f32) -> (f32, f32) {
      %cst_12 = arith.constant 1.000000e+00 : f32
      %28 = arith.cmpf ogt, %arg3, %cst_12 : f32
      scf.condition(%28) %arg3, %arg4 : f32, f32
    } do {
    ^bb0(%arg3: f32, %arg4: f32):
      %cst_12 = arith.constant 5.000000e-01 : f32
      %28 = arith.mulf %arg3, %cst_12 : f32
      %cst_13 = arith.constant 5.000000e-01 : f32
      %29 = arith.mulf %arg4, %cst_13 : f32
      scf.yield %28, %29 : f32, f32
    }
    %c0_10 = arith.constant 0 : index
    %c0_11 = arith.constant 0 : index
    %27 = memref.load %arg2[%c0_10, %c0_11] : memref<1x1xf32, #tpu.memory_space<smem>>
    memref.store %26#1, %arg2[%c0_10, %c0_11] : memref<1x1xf32, #tpu.memory_space<smem>>
    return
  }
}

</mosaic_0001>

<llo_original>
// kernel: fixed_hidden_mlp.1
$region0: #{fixed_hidden_mlp.1}
  #allocation0 [shape = 'u32[]', space=smem, size = 0x4, offset = 0x4, fixed_abs, tag = 'smem constant byte address 0x4 - core index']
  #allocation1 [shape = 'u32[72,128]{1,0:T(1,128)}', space=vmem, size = 0x9000, scoped, tag = 'internal scratch']
  %s0 = inlined_call_operand.vmem [shape: f32[2,20], index: 0, kind: input, shape index: {}]
  %s1 = inlined_call_operand.vmem [shape: f32[64,20], index: 1, kind: input, shape index: {}]
  %s2 = inlined_call_operand.hbm [shape: f32[1,1], index: 2, kind: output, shape index: {}]
  %s3 = sld [smem:[#allocation0]]
  $region25: #{fixed_hidden_mlp.1} parent=0
    _
  %s5 = ssub.s32 1, %s3
  %s6 = scalar_select 0, %s5, %s3
  $region1: #{fixed_hidden_mlp.1} parent=0
    #allocation2 [shape = 'u8[512]{0}', space=smem, size = 0x200, scoped, tag = 'output window, operand 0, single buffered']
    #allocation3 [shape = 's32[1]{0}', space=sflag, size = 0x4, scoped, tag = 'scoped memory for fixed_hidden_mlp.1']
    %7 = vsyncpa [#allocation3], 0
    // Predicated region
    $region2: #{fixed_hidden_mlp.1} parent=1 // pred_check
      _
    $region3: #{fixed_hidden_mlp.1} parent=1 // pred_check_branch
      %9 = sbr.rel (0) target = $region5
    $region4: #{fixed_hidden_mlp.1} parent=1 // pred_region
      _
    $region5: #{fixed_hidden_mlp.1} parent=1 // pred_fallthru
      _
    // Predicated region
    $region6: #{fixed_hidden_mlp.1} parent=1 // pred_check
      _
    $region7: #{fixed_hidden_mlp.1} parent=1 // pred_check_branch
      %11 = sbr.rel (0) target = $region9
    $region8: #{fixed_hidden_mlp.1} parent=1 // pred_region
      _
    $region9: #{fixed_hidden_mlp.1} parent=1 // pred_fallthru
      _
    %v12 = vld [vmem:[%s0] sm:$0x3]
    %v13 = vld [vmem:[%s1] sm:$0x1]
    %v14 = vld [vmem:[%s1 + $0x8] sm:$0x1]
    %v15 = vld [vmem:[%s1 + $0x10] sm:$0xff]
    %v16 = vld [vmem:[%s1 + $0x18] sm:$0xff]
    %v17 = vld [vmem:[%s1 + $0x20] sm:$0xf]
    %v18 = vld [vmem:[%s1 + $0x28] sm:$0xff]
    %v19 = vld [vmem:[%s1 + $0x30] sm:$0xff]
    %v20 = vld [vmem:[%s1 + $0x38] sm:$0xf]
    %v21 = vperm.slane %v13, 0
    %vm22 = vcmask 162816
    %v24 = vsel %vm22, %v12, 0
    %vm26 = vcmask 1043456
    %v28 = vsel %vm26, %v17, 0
    %30 = vmatpush.msra.mxu0 0.0
    %31 = vmatpush.msra.mxu0 0.0
    %32 = vmatpush.msra.mxu0 0.0
    %33 = vmatpush.msra.mxu0 0.0
    %34 = vmatpush.msra.mxu0 0.0
    %35 = vmatpush.msra.mxu0 0.0
    %36 = vmatpush.msra.mxu0 0.0
    %37 = vmatpush.msra.mxu0 0.0
    %38 = vmatpush.msra.mxu0 0.0
    %39 = vmatpush.msra.mxu0 0.0
    %40 = vmatpush.msra.mxu0 0.0
    %41 = vmatpush.msra.mxu0 0.0
    %42 = vmatpush.msra.mxu0 0.0
    %43 = vmatpush.msra.mxu0 %v28
    %44 = vmatpush.msra.mxu0 %v16
    %45 = vmatpush.msra.mxu0 %v15
    %46 = vmatmul.f32.gmra.mxu0 %v24
    %v47 = vpop.f32.mrf.mxu0
    %v48 = vadd.f32 %v21, %v47
    %49 = vdwg.mxu0
    %v50 = vmax.f32 %v48, 0.0
    %v51 = vperm.slane %v14, 0
    %v53 = vsel %vm22, %v50, 0
    %v56 = vsel %vm26, %v20, 0
    %58 = vmatpush.msra.mxu0 0.0
    %59 = vmatpush.msra.mxu0 0.0
    %60 = vmatpush.msra.mxu0 0.0
    %61 = vmatpush.msra.mxu0 0.0
    %62 = vmatpush.msra.mxu0 0.0
    %63 = vmatpush.msra.mxu0 0.0
    %64 = vmatpush.msra.mxu0 0.0
    %65 = vmatpush.msra.mxu0 0.0
    %66 = vmatpush.msra.mxu0 0.0
    %67 = vmatpush.msra.mxu0 0.0
    %68 = vmatpush.msra.mxu0 0.0
    %69 = vmatpush.msra.mxu0 0.0
    %70 = vmatpush.msra.mxu0 0.0
    %71 = vmatpush.msra.mxu0 %v56
    %72 = vmatpush.msra.mxu0 %v19
    %73 = vmatpush.msra.mxu0 %v18
    %74 = vmatmul.f32.gmra.mxu0 %v53
    %v75 = vpop.f32.mrf.mxu0
    %v76 = vadd.f32 %v51, %v75
    %77 = vdwg.mxu0
    %v78 = vand.u32 2147483647, %v76
    %vm79 = vcmask 156672
    %v80 = vsel %vm79, %v78, 0.0
    %81 = vadd.xlane.f32.xlu0 %v80
    %v82 = vpop.xlane.xlu0 %81
    %v83 = vrot.slane %v82, 4
    %v84 = vadd.f32 %v82, %v83
    %v85 = vrot.slane %v84, 2
    %v86 = vadd.f32 %v84, %v85
    %v87 = vrot.slane %v86, 1
    %v88 = vadd.f32 %v86, %v87
    %s89 = vtos %v88
    %v90 = vsel %vm79, %v76, 0.0
    %91 = vadd.xlane.f32.xlu0 %v90
    %v92 = vpop.xlane.xlu0 %91
    %v93 = vrot.slane %v92, 4
    %v94 = vadd.f32 %v92, %v93
    %v95 = vrot.slane %v94, 2
    %v96 = vadd.f32 %v94, %v95
    %v97 = vrot.slane %v96, 1
    %v98 = vadd.f32 %v96, %v97
    %s99 = vtos %v98
    // While loop
    $region10: #{fixed_hidden_mlp.1} parent=1 // loop_pre_header
      _
    $region11: #{fixed_hidden_mlp.1} parent=1 // loop_header
      %s101 = sphi %s89, %s107
      %s102 = sphi %s99, %s108
      %p103 = scmp.gt.f32.partialorder %s101, 1.0
      %p104 = pneg %p103
    $region12: #{fixed_hidden_mlp.1} parent=1 // loop_header_branch
      %106 = sbr.rel (%p104) target = $region16
    $region13: #{fixed_hidden_mlp.1} parent=1 // loop_body
      %s107 = smul.f32 %s101, 0.5
      %s108 = smul.f32 %s102, 0.5
    $region14: #{fixed_hidden_mlp.1} parent=1 // loop_footer
      _
    $region15: #{fixed_hidden_mlp.1} parent=1 // loop_footer_branch
      %100 = sbr.rel target = $region11
    $region16: #{fixed_hidden_mlp.1} parent=1 // loop_exit
      _
    %s109 = scalar_lea.smem [#allocation2], 0
    %110 = sst [smem:[%s109]] %s102
    // Predicated region
    $region17: #{fixed_hidden_mlp.1} parent=1 // pred_check
      _
    $region18: #{fixed_hidden_mlp.1} parent=1 // pred_check_branch
      %112 = sbr.rel (0) target = $region20
    $region19: #{fixed_hidden_mlp.1} parent=1 // pred_region
      %114 = vsyncadd [#allocation3], 0
      %s116 = sshll.u32 %s2, 4
      %s117 = int_to_ptr.hbm [resolvable:$true] %s116
      %119 = dma.smem_to_hbm [#allocation2], 16, %s117, [#allocation3]
    $region20: #{fixed_hidden_mlp.1} parent=1 // pred_fallthru
      _
    // Predicated region
    $region21: #{fixed_hidden_mlp.1} parent=1 // pred_check
      _
    $region22: #{fixed_hidden_mlp.1} parent=1 // pred_check_branch
      %121 = sbr.rel (0) target = $region24
    $region23: #{fixed_hidden_mlp.1} parent=1 // pred_region
      %123 = dma.done [#allocation3], 16
    $region24: #{fixed_hidden_mlp.1} parent=1 // pred_fallthru
      _
    %124 = sfence
    %125 = vsyncpa [#allocation3], 1

</llo_original>
